<compile_context>
chip_gen: v7x
topology: tpu7x:2x2x1
jax: 0.10.0
libtpu: 0.0.40
codegen_flags: <defaults>
</compile_context>

<pallas_src>
import functools

import jax
import jax.numpy as jnp
from jax.experimental import pallas as pl
from jax.experimental.pallas import tpu as pltpu


def _round_up(x, m):
    return (x + m - 1) // m * m


def _cdiv(a, b):
    return (a + b - 1) // b


def _choose_batch_tile(batch, block_b):
    """bf16-aligned batch tile (multiple of 16), capped at ~batch/4 so the
    parallel batch-grid keeps >= 4 tiles when possible (megacore / 2-TC v7x);
    large batches still get 512+-row tiles for HBM-roofline efficiency."""
    tb = min(_round_up(max(block_b, 16), 16),
             _round_up(max(_cdiv(batch, 4), 1), 16))
    tb = max(tb, 16)
    return tb, _round_up(batch, tb)


# -----------------------------------------------------------------------------
# Pallas kernel: fused candidate scoring + per-tile masked CE partial sum
# -----------------------------------------------------------------------------
def _scores_ce_kernel(seq_ref, cand_ref, out_ref, *, n_cand, tile_b, valid_b):
    # seq_ref : (TB, D)      bf16 sequence embeddings for this batch tile
    # cand_ref: (C, TB, D)   bf16 candidate-major embeddings (c = 0 is target)
    # out_ref : (1, 8, 128)  f32  per-tile partial sum of row losses (dense slab)
    seq = seq_ref[...].astype(jnp.float32)                           # (TB, D)

    def score(c):
        # per-row dot: VPU mul + XLU lane-reduction; MXU deliberately unused
        cand_c = cand_ref[c].astype(jnp.float32)                     # (TB, D)
        return jnp.sum(seq * cand_c, axis=-1, keepdims=True)         # (TB, 1)

    # online softmax over the C candidates (target is candidate 0)
    s0 = score(0)                                                    # (TB, 1)
    m = s0
    se = jnp.ones_like(s0)                                           # exp(s0-m)=1
    for c in range(1, n_cand):                                       # static unroll
        sc = score(c)
        m_new = jnp.maximum(m, sc)
        se = se * jnp.exp(m - m_new) + jnp.exp(sc - m_new)
        m = m_new
    row_loss = (m - s0) + jnp.log(se)                                # (TB, 1)

    # mask padded tail rows (true batch size is a static constant) and emit a
    # single partial sum for this tile as a dense (8,128) write
    row = pl.program_id(0) * tile_b + jax.lax.broadcasted_iota(
        jnp.int32, (tile_b, 1), 0)
    masked = jnp.where(row < valid_b, row_loss, 0.0)                 # (TB, 1)
    partial = jnp.sum(masked, keepdims=True)                         # (1, 1)
    out_ref[...] = jnp.broadcast_to(partial[None], (1, 8, 128))


def pallas_random_ce_loss(seq_emb, cand_emb_cbd, *, valid_b=None,
                          block_b=512, tile_b=None):
    """seq_emb: (B, D) bf16; cand_emb_cbd: (C, B, D) bf16, class 0 = target.
    Returns scalar mean cross-entropy (target always class 0) over `valid_b`."""
    B_in, D = seq_emb.shape
    C, Bc, Dc = cand_emb_cbd.shape
    assert Bc == B_in and Dc == D
    valid_b = B_in if valid_b is None else int(valid_b)

    if tile_b is None:
        tile_b, b_pad = _choose_batch_tile(B_in, block_b)
    else:
        assert tile_b % 16 == 0
        b_pad = _round_up(B_in, tile_b)

    if b_pad != B_in:
        # Fallback only: callers should pad the cheap (C, B) id tensor and the
        # (B, D) sequence BEFORE the embedding gather (random_ce_forward does),
        # so the big (C, B, D) tensor never takes an extra HBM pad pass.
        pad = b_pad - B_in
        seq_emb = jnp.pad(seq_emb, ((0, pad), (0, 0)))
        cand_emb_cbd = jnp.pad(cand_emb_cbd, ((0, 0), (0, pad), (0, 0)))

    grid = (b_pad // tile_b,)

    itemsize = jnp.dtype(seq_emb.dtype).itemsize
    tile_in_bytes = (1 + C) * tile_b * D * itemsize
    # 2x double-buffered input tiles + headroom for f32 temporaries; capped at
    # 32 MiB (v7x has 64 MiB VMEM per TensorCore; v5e/v6e have 128 MiB).
    vmem_limit = int(min(32 << 20, max(4 << 20, 3 * tile_in_bytes)))

    kernel = functools.partial(_scores_ce_kernel, n_cand=C, tile_b=tile_b,
                               valid_b=valid_b)
    partials = pl.pallas_call(
        kernel,
        out_shape=jax.ShapeDtypeStruct((grid[0], 8, 128), jnp.float32),
        grid=grid,
        in_specs=[
            pl.BlockSpec((tile_b, D), lambda i: (i, 0)),
            # TODO(synk): after further gather fusion, sweep pipeline_mode=
            # pl.Buffered(3) here on v5e (DMA-longest phase).
            pl.BlockSpec((C, tile_b, D), lambda i: (0, i, 0)),
        ],
        out_specs=pl.BlockSpec((1, 8, 128), lambda i: (i, 0, 0)),
        compiler_params=pltpu.CompilerParams(
            dimension_semantics=("parallel",),
            vmem_limit_bytes=vmem_limit,
        ),
    )(seq_emb, cand_emb_cbd)

    # per-tile partial sums -> mean over the TRUE (unpadded) batch size
    return jnp.sum(partials[:, 0, 0]) / valid_b


# -----------------------------------------------------------------------------
# Glue: a tiny synthetic "p_model" + the RandomCE forward
# -----------------------------------------------------------------------------
def make_model_params(key, n_items, hidden):
    # synthetic item-embedding table; bf16 halves the kernel's HBM traffic
    item_emb = 0.1 * jax.random.normal(key, (n_items, hidden), jnp.float32)
    return {"item_emb": item_emb.astype(jnp.bfloat16),
            "n_items": n_items, "hidden": hidden}


def encode_sequence(params, item_seq, item_seq_len):
    """Masked-mean sequence encoder (stand-in for the rec-model backbone)."""
    emb = params["item_emb"][item_seq].astype(jnp.float32)           # (B, L, D)
    L = item_seq.shape[1]
    mask = (jnp.arange(L)[None, :] < item_seq_len[:, None]).astype(jnp.float32)
    summed = jnp.sum(emb * mask[:, :, None], axis=1)                 # (B, D)
    denom = jnp.maximum(item_seq_len.astype(jnp.float32), 1.0)[:, None]
    return (summed / denom).astype(params["item_emb"].dtype)         # (B, D)


def sample_negatives(key, target_id, n_items, K):
    """K negatives per row, uniform over all items except the target, sampled
    without replacement (Gumbel top-K trick).
    # TODO(synk): torch.multinomial's exact RNG stream cannot be reproduced;
    # only the sampling distribution (uniform, no target, w/o repl.) matches."""
    B = target_id.shape[0]
    logits = jnp.zeros((B, n_items), jnp.float32)
    logits = logits.at[jnp.arange(B), target_id].set(-jnp.inf)       # exclude target
    gumbel = jax.random.gumbel(key, (B, n_items), jnp.float32)
    _, neg_items = jax.lax.top_k(logits + gumbel, K)                 # (B, K)
    return neg_items.astype(jnp.int32)


def random_ce_forward(params, item_seq, item_seq_len, target_id, key, K,
                      *, block_b=512):
    """Mirrors RandomCE.forward(...) -> scalar loss (targets all class 0)."""
    B = item_seq.shape[0]
    neg_items = sample_negatives(key, target_id, params["n_items"], K)     # (B, K)
    # candidate-major ids: row 0 = positive target, rows 1..K = negatives
    ids_cb = jnp.concatenate([target_id[None, :], neg_items.T], axis=0)    # (C, B)
    seq_emb = encode_sequence(params, item_seq, item_seq_len)              # (B, D)

    # pad the CHEAP tensors (ids, seq) to the batch-tile multiple BEFORE the
    # embedding gather; the (C, B, D) candidate tensor is produced already
    # padded and never re-written by a pad pass.
    tile_b, b_pad = _choose_batch_tile(B, block_b)
    if b_pad != B:
        pad = b_pad - B
        ids_cb = jnp.pad(ids_cb, ((0, 0), (0, pad)))        # id 0 for dummy rows
        seq_emb = jnp.pad(seq_emb, ((0, pad), (0, 0)))

    # TODO(synk): fuse this row-gather into the kernel (scalar-prefetched ids +
    # per-tile DMA gather from the HBM-resident table) to cut candidate-path
    # HBM traffic ~2x; kept in XLA since naive per-row 256 B DMAs for
    # (K+1)*tile rows would not win without a batched/strided gather path.
    cand_emb = params["item_emb"][ids_cb]                                  # (C, b_pad, D)

    return pallas_random_ce_loss(seq_emb, cand_emb, valid_b=B,
                                 block_b=block_b, tile_b=tile_b)


def _reference_loss(seq_emb, cand_emb_cbd):
    seq = seq_emb.astype(jnp.float32)                                # (B, D)
    cand = cand_emb_cbd.astype(jnp.float32)                          # (C, B, D)
    scores = jnp.sum(seq[None, :, :] * cand, axis=-1).T              # (B, C)
    return jnp.mean(jax.nn.logsumexp(scores, axis=-1) - scores[:, 0])


# -----------------------------------------------------------------------------
# Demo
# -----------------------------------------------------------------------------
if __name__ == "__main__":
    B, L, D, n_items, K = 40, 8, 128, 1024, 8   # C = K + 1 = 9

    root = jax.random.PRNGKey(0)
    k_param, k_seq, k_len, k_tgt, k_neg = jax.random.split(root, 5)

    params = make_model_params(k_param, n_items, D)
    item_seq = jax.random.randint(k_seq, (B, L), 0, n_items, dtype=jnp.int32)
    item_seq_len = jax.random.randint(k_len, (B,), 1, L + 1, dtype=jnp.int32)
    target_id = jax.random.randint(k_tgt, (B,), 0, n_items, dtype=jnp.int32)
    # time_seq / time_interval_seq / target_time are unused by this synthetic model.

    # B=40 -> tile_b=16, 3 batch tiles (last one masked in-kernel).  Real perf
    # configs use the default block_b=512 with large batches.
    loss = random_ce_forward(params, item_seq, item_seq_len, target_id, k_neg, K)
    loss = jax.block_until_ready(loss)

    # correctness check of the fused kernel vs. a pure-JAX reference
    neg_items = sample_negatives(k_neg, target_id, n_items, K)
    ids_cb = jnp.concatenate([target_id[None, :], neg_items.T], axis=0)
    seq_emb = encode_sequence(params, item_seq, item_seq_len)
    cand_emb = params["item_emb"][ids_cb]
    ref = _reference_loss(seq_emb, cand_emb)
    assert jnp.allclose(loss, ref, rtol=1e-4, atol=1e-4), (loss, ref)

    print("KERNEL_OK")
</pallas_src>

<mosaic_0001>
module attributes {stable_mosaic.version = 11 : i64} {
  func.func @_scores_ce_kernel(%arg0: i32, %arg1: memref<16x128xbf16, #tpu.memory_space<vmem>>, %arg2: memref<9x16x128xbf16, #tpu.memory_space<vmem>>, %arg3: memref<1x8x128xf32, #tpu.memory_space<vmem>>) attributes {dimension_semantics = [#tpu.dimension_semantics<parallel>], iteration_bounds = array<i64: 3>, scalar_prefetch = 0 : i64, scratch_operands = 0 : i64, tpu.core_type = #tpu.core_type<tc>, window_params = [{transform_indices = @transform_0, window_bounds = array<i64: 16, 128>}, {transform_indices = @transform_1, window_bounds = array<i64: 9, 16, 128>}, {transform_indices = @transform_2, window_bounds = array<i64: 1, 8, 128>}]} {
    %c0 = arith.constant 0 : index
    %c0_0 = arith.constant 0 : index
    %0 = vector.load %arg1[%c0, %c0_0] : memref<16x128xbf16, #tpu.memory_space<vmem>>, vector<16x128xbf16>
    %1 = arith.extf %0 : vector<16x128xbf16> to vector<16x128xf32>
    %c0_1 = arith.constant 0 : index
    %c0_2 = arith.constant 0 : index
    %c0_3 = arith.constant 0 : index
    %2 = vector.load %arg2[%c0_1, %c0_2, %c0_3] : memref<9x16x128xbf16, #tpu.memory_space<vmem>>, vector<1x16x128xbf16>
    %3 = vector.shape_cast %2 : vector<1x16x128xbf16> to vector<16x128xbf16>
    %4 = arith.extf %3 : vector<16x128xbf16> to vector<16x128xf32>
    %5 = arith.mulf %1, %4 : vector<16x128xf32>
    %cst = arith.constant dense<0.000000e+00> : vector<16xf32>
    %6 = vector.multi_reduction <add>, %5, %cst [1] : vector<16x128xf32> to vector<16xf32>
    %7 = vector.shape_cast %6 : vector<16xf32> to vector<16x1xf32>
    %cst_4 = arith.constant 1.000000e+00 : f32
    %8 = vector.broadcast %cst_4 : f32 to vector<16x1xf32>
    %c1 = arith.constant 1 : index
    %c0_5 = arith.constant 0 : index
    %c0_6 = arith.constant 0 : index
    %9 = vector.load %arg2[%c1, %c0_5, %c0_6] : memref<9x16x128xbf16, #tpu.memory_space<vmem>>, vector<1x16x128xbf16>
    %10 = vector.shape_cast %9 : vector<1x16x128xbf16> to vector<16x128xbf16>
    %11 = arith.extf %10 : vector<16x128xbf16> to vector<16x128xf32>
    %12 = arith.mulf %1, %11 : vector<16x128xf32>
    %cst_7 = arith.constant dense<0.000000e+00> : vector<16xf32>
    %13 = vector.multi_reduction <add>, %12, %cst_7 [1] : vector<16x128xf32> to vector<16xf32>
    %14 = vector.shape_cast %13 : vector<16xf32> to vector<16x1xf32>
    %15 = arith.maximumf %7, %14 : vector<16x1xf32>
    %16 = arith.subf %7, %15 : vector<16x1xf32>
    %17 = math.exp %16 : vector<16x1xf32>
    %18 = arith.mulf %8, %17 : vector<16x1xf32>
    %19 = arith.subf %14, %15 : vector<16x1xf32>
    %20 = math.exp %19 : vector<16x1xf32>
    %21 = arith.addf %18, %20 : vector<16x1xf32>
    %c2 = arith.constant 2 : index
    %c0_8 = arith.constant 0 : index
    %c0_9 = arith.constant 0 : index
    %22 = vector.load %arg2[%c2, %c0_8, %c0_9] : memref<9x16x128xbf16, #tpu.memory_space<vmem>>, vector<1x16x128xbf16>
    %23 = vector.shape_cast %22 : vector<1x16x128xbf16> to vector<16x128xbf16>
    %24 = arith.extf %23 : vector<16x128xbf16> to vector<16x128xf32>
    %25 = arith.mulf %1, %24 : vector<16x128xf32>
    %cst_10 = arith.constant dense<0.000000e+00> : vector<16xf32>
    %26 = vector.multi_reduction <add>, %25, %cst_10 [1] : vector<16x128xf32> to vector<16xf32>
    %27 = vector.shape_cast %26 : vector<16xf32> to vector<16x1xf32>
    %28 = arith.maximumf %15, %27 : vector<16x1xf32>
    %29 = arith.subf %15, %28 : vector<16x1xf32>
    %30 = math.exp %29 : vector<16x1xf32>
    %31 = arith.mulf %21, %30 : vector<16x1xf32>
    %32 = arith.subf %27, %28 : vector<16x1xf32>
    %33 = math.exp %32 : vector<16x1xf32>
    %34 = arith.addf %31, %33 : vector<16x1xf32>
    %c3 = arith.constant 3 : index
    %c0_11 = arith.constant 0 : index
    %c0_12 = arith.constant 0 : index
    %35 = vector.load %arg2[%c3, %c0_11, %c0_12] : memref<9x16x128xbf16, #tpu.memory_space<vmem>>, vector<1x16x128xbf16>
    %36 = vector.shape_cast %35 : vector<1x16x128xbf16> to vector<16x128xbf16>
    %37 = arith.extf %36 : vector<16x128xbf16> to vector<16x128xf32>
    %38 = arith.mulf %1, %37 : vector<16x128xf32>
    %cst_13 = arith.constant dense<0.000000e+00> : vector<16xf32>
    %39 = vector.multi_reduction <add>, %38, %cst_13 [1] : vector<16x128xf32> to vector<16xf32>
    %40 = vector.shape_cast %39 : vector<16xf32> to vector<16x1xf32>
    %41 = arith.maximumf %28, %40 : vector<16x1xf32>
    %42 = arith.subf %28, %41 : vector<16x1xf32>
    %43 = math.exp %42 : vector<16x1xf32>
    %44 = arith.mulf %34, %43 : vector<16x1xf32>
    %45 = arith.subf %40, %41 : vector<16x1xf32>
    %46 = math.exp %45 : vector<16x1xf32>
    %47 = arith.addf %44, %46 : vector<16x1xf32>
    %c4 = arith.constant 4 : index
    %c0_14 = arith.constant 0 : index
    %c0_15 = arith.constant 0 : index
    %48 = vector.load %arg2[%c4, %c0_14, %c0_15] : memref<9x16x128xbf16, #tpu.memory_space<vmem>>, vector<1x16x128xbf16>
    %49 = vector.shape_cast %48 : vector<1x16x128xbf16> to vector<16x128xbf16>
    %50 = arith.extf %49 : vector<16x128xbf16> to vector<16x128xf32>
    %51 = arith.mulf %1, %50 : vector<16x128xf32>
    %cst_16 = arith.constant dense<0.000000e+00> : vector<16xf32>
    %52 = vector.multi_reduction <add>, %51, %cst_16 [1] : vector<16x128xf32> to vector<16xf32>
    %53 = vector.shape_cast %52 : vector<16xf32> to vector<16x1xf32>
    %54 = arith.maximumf %41, %53 : vector<16x1xf32>
    %55 = arith.subf %41, %54 : vector<16x1xf32>
    %56 = math.exp %55 : vector<16x1xf32>
    %57 = arith.mulf %47, %56 : vector<16x1xf32>
    %58 = arith.subf %53, %54 : vector<16x1xf32>
    %59 = math.exp %58 : vector<16x1xf32>
    %60 = arith.addf %57, %59 : vector<16x1xf32>
    %c5 = arith.constant 5 : index
    %c0_17 = arith.constant 0 : index
    %c0_18 = arith.constant 0 : index
    %61 = vector.load %arg2[%c5, %c0_17, %c0_18] : memref<9x16x128xbf16, #tpu.memory_space<vmem>>, vector<1x16x128xbf16>
    %62 = vector.shape_cast %61 : vector<1x16x128xbf16> to vector<16x128xbf16>
    %63 = arith.extf %62 : vector<16x128xbf16> to vector<16x128xf32>
    %64 = arith.mulf %1, %63 : vector<16x128xf32>
    %cst_19 = arith.constant dense<0.000000e+00> : vector<16xf32>
    %65 = vector.multi_reduction <add>, %64, %cst_19 [1] : vector<16x128xf32> to vector<16xf32>
    %66 = vector.shape_cast %65 : vector<16xf32> to vector<16x1xf32>
    %67 = arith.maximumf %54, %66 : vector<16x1xf32>
    %68 = arith.subf %54, %67 : vector<16x1xf32>
    %69 = math.exp %68 : vector<16x1xf32>
    %70 = arith.mulf %60, %69 : vector<16x1xf32>
    %71 = arith.subf %66, %67 : vector<16x1xf32>
    %72 = math.exp %71 : vector<16x1xf32>
    %73 = arith.addf %70, %72 : vector<16x1xf32>
    %c6 = arith.constant 6 : index
    %c0_20 = arith.constant 0 : index
    %c0_21 = arith.constant 0 : index
    %74 = vector.load %arg2[%c6, %c0_20, %c0_21] : memref<9x16x128xbf16, #tpu.memory_space<vmem>>, vector<1x16x128xbf16>
    %75 = vector.shape_cast %74 : vector<1x16x128xbf16> to vector<16x128xbf16>
    %76 = arith.extf %75 : vector<16x128xbf16> to vector<16x128xf32>
    %77 = arith.mulf %1, %76 : vector<16x128xf32>
    %cst_22 = arith.constant dense<0.000000e+00> : vector<16xf32>
    %78 = vector.multi_reduction <add>, %77, %cst_22 [1] : vector<16x128xf32> to vector<16xf32>
    %79 = vector.shape_cast %78 : vector<16xf32> to vector<16x1xf32>
    %80 = arith.maximumf %67, %79 : vector<16x1xf32>
    %81 = arith.subf %67, %80 : vector<16x1xf32>
    %82 = math.exp %81 : vector<16x1xf32>
    %83 = arith.mulf %73, %82 : vector<16x1xf32>
    %84 = arith.subf %79, %80 : vector<16x1xf32>
    %85 = math.exp %84 : vector<16x1xf32>
    %86 = arith.addf %83, %85 : vector<16x1xf32>
    %c7 = arith.constant 7 : index
    %c0_23 = arith.constant 0 : index
    %c0_24 = arith.constant 0 : index
    %87 = vector.load %arg2[%c7, %c0_23, %c0_24] : memref<9x16x128xbf16, #tpu.memory_space<vmem>>, vector<1x16x128xbf16>
    %88 = vector.shape_cast %87 : vector<1x16x128xbf16> to vector<16x128xbf16>
    %89 = arith.extf %88 : vector<16x128xbf16> to vector<16x128xf32>
    %90 = arith.mulf %1, %89 : vector<16x128xf32>
    %cst_25 = arith.constant dense<0.000000e+00> : vector<16xf32>
    %91 = vector.multi_reduction <add>, %90, %cst_25 [1] : vector<16x128xf32> to vector<16xf32>
    %92 = vector.shape_cast %91 : vector<16xf32> to vector<16x1xf32>
    %93 = arith.maximumf %80, %92 : vector<16x1xf32>
    %94 = arith.subf %80, %93 : vector<16x1xf32>
    %95 = math.exp %94 : vector<16x1xf32>
    %96 = arith.mulf %86, %95 : vector<16x1xf32>
    %97 = arith.subf %92, %93 : vector<16x1xf32>
    %98 = math.exp %97 : vector<16x1xf32>
    %99 = arith.addf %96, %98 : vector<16x1xf32>
    %c8 = arith.constant 8 : index
    %c0_26 = arith.constant 0 : index
    %c0_27 = arith.constant 0 : index
    %100 = vector.load %arg2[%c8, %c0_26, %c0_27] : memref<9x16x128xbf16, #tpu.memory_space<vmem>>, vector<1x16x128xbf16>
    %101 = vector.shape_cast %100 : vector<1x16x128xbf16> to vector<16x128xbf16>
    %102 = arith.extf %101 : vector<16x128xbf16> to vector<16x128xf32>
    %103 = arith.mulf %1, %102 : vector<16x128xf32>
    %cst_28 = arith.constant dense<0.000000e+00> : vector<16xf32>
    %104 = vector.multi_reduction <add>, %103, %cst_28 [1] : vector<16x128xf32> to vector<16xf32>
    %105 = vector.shape_cast %104 : vector<16xf32> to vector<16x1xf32>
    %106 = arith.maximumf %93, %105 : vector<16x1xf32>
    %107 = arith.subf %93, %106 : vector<16x1xf32>
    %108 = math.exp %107 : vector<16x1xf32>
    %109 = arith.mulf %99, %108 : vector<16x1xf32>
    %110 = arith.subf %105, %106 : vector<16x1xf32>
    %111 = math.exp %110 : vector<16x1xf32>
    %112 = arith.addf %109, %111 : vector<16x1xf32>
    %113 = arith.subf %106, %7 : vector<16x1xf32>
    %114 = math.log %112 : vector<16x1xf32>
    %115 = arith.addf %113, %114 : vector<16x1xf32>
    %c16_i32 = arith.constant 16 : i32
    %116 = arith.muli %arg0, %c16_i32 : i32
    %117 = tpu.iota {dimensions = array<i32: 0>} : vector<16x1xi32>
    %118 = vector.broadcast %116 : i32 to vector<16x1xi32>
    %119 = arith.addi %118, %117 : vector<16x1xi32>
    %c40_i32 = arith.constant 40 : i32
    %120 = vector.broadcast %c40_i32 : i32 to vector<16x1xi32>
    %121 = arith.cmpi slt, %119, %120 : vector<16x1xi32>
    %cst_29 = arith.constant 0.000000e+00 : f32
    %122 = vector.broadcast %cst_29 : f32 to vector<16x1xf32>
    %123 = arith.select %121, %115, %122 : vector<16x1xi1>, vector<16x1xf32>
    %124 = vector.shape_cast %123 : vector<16x1xf32> to vector<1x16x1xf32>
    %cst_30 = arith.constant dense<0.000000e+00> : vector<1xf32>
    %125 = vector.multi_reduction <add>, %124, %cst_30 [1, 2] : vector<1x16x1xf32> to vector<1xf32>
    %126 = vector.shape_cast %125 : vector<1xf32> to vector<1x1x1xf32>
    %127 = vector.extract %126[0, 0, 0] : f32 from vector<1x1x1xf32>
    %128 = vector.broadcast %127 : f32 to vector<1x1xf32>
    %129 = vector.shape_cast %128 : vector<1x1xf32> to vector<1x1x1xf32>
    %130 = vector.shape_cast %129 : vector<1x1x1xf32> to vector<1x1x1xf32>
    %131 = vector.broadcast %130 : vector<1x1x1xf32> to vector<1x8x128xf32>
    %c0_31 = arith.constant 0 : index
    %c0_32 = arith.constant 0 : index
    %c0_33 = arith.constant 0 : index
    %132 = vector.load %arg3[%c0_31, %c0_32, %c0_33] : memref<1x8x128xf32, #tpu.memory_space<vmem>>, vector<1x8x128xf32>
    tpu.vector_store %arg3[%c0_31, %c0_32, %c0_33], %131 {strides = array<i32>} : memref<1x8x128xf32, #tpu.memory_space<vmem>>, vector<1x8x128xf32>,
    return
  }
  func.func @transform_0(%arg0: i32) -> (i32, i32) {
    %c0_i32 = arith.constant 0 : i32
    %c0_i32_0 = arith.constant 0 : i32
    return %arg0, %c0_i32 : i32, i32
  }
  func.func @transform_1(%arg0: i32) -> (i32, i32, i32) {
    %c0_i32 = arith.constant 0 : i32
    %c0_i32_0 = arith.constant 0 : i32
    %c0_i32_1 = arith.constant 0 : i32
    return %c0_i32, %arg0, %c0_i32_0 : i32, i32, i32
  }
  func.func @transform_2(%arg0: i32) -> (i32, i32, i32) {
    %c0_i32 = arith.constant 0 : i32
    %c0_i32_0 = arith.constant 0 : i32
    %c0_i32_1 = arith.constant 0 : i32
    return %arg0, %c0_i32, %c0_i32_0 : i32, i32, i32
  }
}

</mosaic_0001>

<llo_original>
// kernel: tpu_custom_call.1
$region0: #{tpu_custom_call.1}
  #allocation0 [shape = 'u32[]', space=smem, size = 0x4, offset = 0x4, fixed_abs, tag = 'smem constant byte address 0x4 - core index']
  #allocation1 [shape = 'u32[144,128]{1,0:T(1,128)}', space=vmem, size = 0x12000, scoped, tag = 'internal scratch']
  #allocation8 [shape = 's32[]', space=sflag, size = 0x4, offset = 0, fixed_abs, tag = 'sflag constant byte address 0x0 - dummy sync flag']
  %s0 = inlined_call_operand.hbm [shape: bf16[48,128], index: 0, kind: input, shape index: {}]
  %s1 = inlined_call_operand.hbm [shape: bf16[9,48,128], index: 1, kind: input, shape index: {}]
  %s2 = inlined_call_operand.hbm [shape: f32[3,8,128], index: 2, kind: output, shape index: {}]
  %s3 = sld [smem:[#allocation0]]
  $region49: #{tpu_custom_call.1} parent=0
    _
  %s5 = ssub.s32 1, %s3
  %s6 = scalar_select 0, %s5, %s3
  $region1: #{tpu_custom_call.1} parent=0
    #allocation2 [shape = 'u8[8192]{0}', space=vmem, size = 0x2000, scoped, tag = 'input window, operand 0']
    #allocation3 [shape = 's32[2]{0}', space=sflag, size = 0x8, scoped, tag = 'scoped memory for tpu_custom_call.1']
    #allocation4 [shape = 's32[2]{0}', space=sflag, size = 0x8, scoped, tag = 'scoped memory for tpu_custom_call.1']
    #allocation5 [shape = 'u8[73728]{0}', space=vmem, size = 0x12000, scoped, tag = 'input window, operand 1']
    #allocation6 [shape = 's32[2]{0}', space=sflag, size = 0x8, scoped, tag = 'scoped memory for tpu_custom_call.1']
    #allocation7 [shape = 'u8[8192]{0}', space=vmem, size = 0x2000, scoped, tag = 'output window, operand 0']
    %7 = vsyncpa [#allocation3], 0
    %s8 = scalar_lea.sflag [#allocation3], 1
    %9 = vsyncpa %s8, 0
    %10 = vsyncpa [#allocation6], 0
    %s11 = scalar_lea.sflag [#allocation6], 1
    %12 = vsyncpa %s11, 0
    %13 = vsyncpa [#allocation4], 0
    %s14 = scalar_lea.sflag [#allocation4], 1
    %15 = vsyncpa %s14, 0
    loop: start=0, step=1, limit=5
    $region2: #{tpu_custom_call.1} parent=1 // loop_pre_header
      _
    $region3: #{tpu_custom_call.1} parent=1 // loop_header
      %s17 = sphi 0, %s21
      %p18 = scmp.ge.s32.totalorder %s17, 5
      %s27 = sphi 0, %s29
      %s30 = sphi 0, %s27
      %s31 = sphi 0, %s30
      %s47 = sphi 0, %s31
      %s53 = sphi 0, %s55
      %s56 = sphi 0, %s53
      %s57 = sphi 0, %s56
      %s73 = sphi 0, %s57
      %s79 = sphi 0, %s81
      %s82 = sphi 0, %s79
      %s83 = sphi 0, %s82
      %s99 = sphi 0, %s83
    $region4: #{tpu_custom_call.1} parent=1 // loop_header_branch
      %20 = sbr.rel (%p18) target = $region8
    $region5: #{tpu_custom_call.1} parent=1 // loop_body
      %s22 = ssub.s32 %s17, 1
      %s23 = ssub.s32 %s17, 2
      %s24 = sadd.s32 %s17, 1
      %s25 = ssub.s32 %s17, %s24
      %p26 = scmp.eq.s32.totalorder %s25, 0
      %s28 = sadd.s32 %s27, 1
      %s29 = scalar_select %p26, %s27, %s28
      %p32 = pneg %p26
      %p33 = scmp.eq.s32.totalorder %s17, 2
      %p34 = por %p32, %p33
      %p35 = scmp.ne.s32.totalorder %s27, %s30
      %p36 = scmp.eq.s32.totalorder %s17, 0
      %p37 = por %p35, %p36
      %p38 = scmp.ne.s32.totalorder %s27, %s30
      %p39 = scmp.eq.s32.totalorder %s22, 2
      %p40 = por %p38, %p39
      %p41 = scmp.ne.s32.totalorder %s30, %s31
      %p42 = scmp.eq.s32.totalorder %s22, 0
      %p43 = por %p41, %p42
      %p44 = scmp.ne.s32.totalorder %s30, %s31
      %p45 = scmp.eq.s32.totalorder %s23, 2
      %p46 = por %p44, %p45
      %p48 = scmp.ne.s32.totalorder %s31, %s47
      %p49 = scmp.eq.s32.totalorder %s23, 0
      %p50 = por %p48, %p49
      %s51 = ssub.s32 %s17, %s24
      %p52 = scmp.eq.s32.totalorder %s51, 0
      %s54 = sadd.s32 %s53, 1
      %s55 = scalar_select %p52, %s53, %s54
      %p58 = pneg %p52
      %p59 = scmp.eq.s32.totalorder %s17, 2
      %p60 = por %p58, %p59
      %p61 = scmp.ne.s32.totalorder %s53, %s56
      %p62 = scmp.eq.s32.totalorder %s17, 0
      %p63 = por %p61, %p62
      %p64 = scmp.ne.s32.totalorder %s53, %s56
      %p65 = scmp.eq.s32.totalorder %s22, 2
      %p66 = por %p64, %p65
      %p67 = scmp.ne.s32.totalorder %s56, %s57
      %p68 = scmp.eq.s32.totalorder %s22, 0
      %p69 = por %p67, %p68
      %p70 = scmp.ne.s32.totalorder %s56, %s57
      %p71 = scmp.eq.s32.totalorder %s23, 2
      %p72 = por %p70, %p71
      %p74 = scmp.ne.s32.totalorder %s57, %s73
      %p75 = scmp.eq.s32.totalorder %s23, 0
      %p76 = por %p74, %p75
      %s77 = ssub.s32 %s17, %s24
      %p78 = scmp.eq.s32.totalorder %s77, 0
      %s80 = sadd.s32 %s79, 1
      %s81 = scalar_select %p78, %s79, %s80
      %p84 = pneg %p78
      %p85 = scmp.eq.s32.totalorder %s17, 2
      %p86 = por %p84, %p85
      %p87 = scmp.ne.s32.totalorder %s79, %s82
      %p88 = scmp.eq.s32.totalorder %s17, 0
      %p89 = por %p87, %p88
      %p90 = scmp.ne.s32.totalorder %s79, %s82
      %p91 = scmp.eq.s32.totalorder %s22, 2
      %p92 = por %p90, %p91
      %p93 = scmp.ne.s32.totalorder %s82, %s83
      %p94 = scmp.eq.s32.totalorder %s22, 0
      %p95 = por %p93, %p94
      %p96 = scmp.ne.s32.totalorder %s82, %s83
      %p97 = scmp.eq.s32.totalorder %s23, 2
      %p98 = por %p96, %p97
      %p100 = scmp.ne.s32.totalorder %s83, %s99
      %p101 = scmp.eq.s32.totalorder %s23, 0
      %p102 = por %p100, %p101
      %p103 = scmp.le.s32.totalorder 1, %s17
      %p104 = scmp.lt.s32.totalorder %s17, 4
      %p105 = pnand %p103, %p104
      %p106 = pneg %p105
      // Predicated region
      $region9: #{tpu_custom_call.1} parent=5 // pred_check
        _
      $region10: #{tpu_custom_call.1} parent=5 // pred_check_branch
        %108 = sbr.rel (%p105) target = $region12
      $region11: #{tpu_custom_call.1} parent=5 // pred_region
        %s109 = ssub.s32 %s17, 1
      $region12: #{tpu_custom_call.1} parent=5 // pred_fallthru
        _
      %p110 = scmp.lt.s32.totalorder %s17, 3
      // Predicated region
      $region13: #{tpu_custom_call.1} parent=5 // pred_check
        %p111 = pneg %p110
      $region14: #{tpu_custom_call.1} parent=5 // pred_check_branch
        %113 = sbr.rel (%p111) target = $region16
      $region15: #{tpu_custom_call.1} parent=5 // pred_region
        // Predicated region
        $region17: #{tpu_custom_call.1} parent=15 // pred_check
          %p114 = pneg %p37
        $region18: #{tpu_custom_call.1} parent=15 // pred_check_branch
          %116 = sbr.rel (%p114) target = $region20
        $region19: #{tpu_custom_call.1} parent=15 // pred_region
          %s117 = sand.u32 %s27, 1
          %s118 = scalar_lea.sflag [#allocation3], %s117
          %s119 = sand.u32 %s27, 1
          %s120 = smul.addr %s119, 8
          %s121 = scalar_lea.vmem [#allocation2], %s120
          %s122 = smul.u32 2, %s17
          %s124 = ssub.s32 128, 128
          %125 = vsyncadd %s118, %s124
          %s126 = smul.addr %s122, 64
          %s127 = scalar_lea.hbm %s0, %s126
          %s128 = sshll.u32 %s121, 4
          %s129 = int_to_ptr.vmem [resolvable:$true] %s128
          %134 = dma.hbm_to_vmem [thread:$0]  %s127, 128, %s129, %s118, 64, 64, 4
        $region20: #{tpu_custom_call.1} parent=15 // pred_fallthru
          _
        // Predicated region
        $region21: #{tpu_custom_call.1} parent=15 // pred_check
          %p135 = pneg %p63
        $region22: #{tpu_custom_call.1} parent=15 // pred_check_branch
          %137 = sbr.rel (%p135) target = $region24
        $region23: #{tpu_custom_call.1} parent=15 // pred_region
          #allocation9 [shape = 'u32[6]{0}', space=smem, size = 0x18, scoped, tag = 'DMA stride descriptor']
          %s138 = sand.u32 %s53, 1
          %s139 = scalar_lea.sflag [#allocation6], %s138
          %s140 = sand.u32 %s53, 1
          %s141 = smul.addr %s140, 72
          %s142 = scalar_lea.vmem [#allocation5], %s141
          %s143 = smul.u32 2, %s17
          %s145 = ssub.s32 1152, 1152
          %146 = vsyncadd %s139, %s145
          %s147 = smul.addr %s143, 64
          %s148 = scalar_lea.hbm %s1, %s147
          %s150 = sshll.u32 1, 14
          %s151 = sxor.u32 4294967295, %s150
          %s153 = sld [smem:[#allocation0]]
          %s154 = sadd.s32 2, %s153
          %s156 = sshll.u32 7, 26
          %s157 = sxor.u32 4294967295, %s156
          %s158 = sand.u32 0, %s157
          %s159 = sshll.u32 %s154, 26
          %s160 = sor.u32 %s158, %s159
          %s161 = sshll.u32 %s142, 4
          %s162 = int_to_ptr.vmem [resolvable:$true] %s161
          %168 = sst [smem:[#allocation9]] 384
          %s169 = scalar_lea.smem [#allocation9], 1
          %170 = sst [smem:[%s169]] 128
          %s171 = scalar_lea.smem [#allocation9], 2
          %172 = sst [smem:[%s171]] 2
          %s173 = scalar_lea.smem [#allocation9], 3
          %174 = sst [smem:[%s173]] 64
          %s175 = scalar_lea.smem [#allocation9], 4
          %176 = sst [smem:[%s175]] 64
          %s177 = scalar_lea.smem [#allocation9], 5
          %178 = sst [smem:[%s177]] 4
          %180 = dma.general %s148, 1152, %s162, %s139, [#allocation8], [#allocation9], %s160, 0
        $region24: #{tpu_custom_call.1} parent=15 // pred_fallthru
          _
      $region16: #{tpu_custom_call.1} parent=5 // pred_fallthru
        _
      %p181 = scmp.le.s32.totalorder 1, %s17
      %p182 = scmp.lt.s32.totalorder %s17, 4
      %p183 = pnand %p181, %p182
      %p184 = pneg %p183
      // Predicated region
      $region25: #{tpu_custom_call.1} parent=5 // pred_check
        _
      $region26: #{tpu_custom_call.1} parent=5 // pred_check_branch
        %186 = sbr.rel (%p183) target = $region28
      $region27: #{tpu_custom_call.1} parent=5 // pred_region
        %s187 = ssub.s32 %s17, 1
        %s188 = sand.u32 %s30, 1
        %s189 = scalar_lea.sflag [#allocation3], %s188
        %s190 = sand.u32 %s30, 1
        %s191 = smul.addr %s190, 8
        %s192 = scalar_lea.vmem [#allocation2], %s191
        // Predicated region
        $region29: #{tpu_custom_call.1} parent=27 // pred_check
          %p193 = pneg %p43
        $region30: #{tpu_custom_call.1} parent=27 // pred_check_branch
          %195 = sbr.rel (%p193) target = $region32
        $region31: #{tpu_custom_call.1} parent=27 // pred_region
          %196 = dma.done %s189, 128
        $region32: #{tpu_custom_call.1} parent=27 // pred_fallthru
          _
        %s197 = sand.u32 %s56, 1
        %s198 = scalar_lea.sflag [#allocation6], %s197
        %s199 = sand.u32 %s56, 1
        %s200 = smul.addr %s199, 72
        %s201 = scalar_lea.vmem [#allocation5], %s200
        // Predicated region
        $region33: #{tpu_custom_call.1} parent=27 // pred_check
          %p202 = pneg %p69
        $region34: #{tpu_custom_call.1} parent=27 // pred_check_branch
          %204 = sbr.rel (%p202) target = $region36
        $region35: #{tpu_custom_call.1} parent=27 // pred_region
          %205 = dma.done %s198, 1152
        $region36: #{tpu_custom_call.1} parent=27 // pred_fallthru
          _
        %s206 = sand.u32 %s30, 1
        %s207 = scalar_lea.sflag [#allocation3], %s206
        %s208 = sand.u32 %s30, 1
        %s209 = smul.addr %s208, 8
        %s210 = scalar_lea.vmem [#allocation2], %s209
        %p211 = pneg %p43
        %p212 = pneg %p40
        %s213 = sand.u32 %s56, 1
        %s214 = scalar_lea.sflag [#allocation6], %s213
        %s215 = sand.u32 %s56, 1
        %s216 = smul.addr %s215, 72
        %s217 = scalar_lea.vmem [#allocation5], %s216
        %p218 = pneg %p69
        %p219 = pneg %p66
        %p220 = pneg %p95
        %p221 = pneg %p92
        %s222 = sand.u32 %s82, 1
        %s223 = scalar_lea.sflag [#allocation4], %s222
        %s224 = sand.u32 %s82, 1
        %s225 = smul.addr %s224, 8
        %s226 = scalar_lea.vmem [#allocation7], %s225
        %s227 = smul.u32 2, %s22
        %s228 = smul.u32 2, %s22
        %v229 = vld [vmem:[%s192] sm:$0xf]
        %v230 = vld [vmem:[%s192 + $0x4] sm:$0xf]
        %v231 = vunpack.c.l.bf16 %v229
        %v232 = vunpack.c.l.bf16 %v230
        %v233 = vld [vmem:[%s201] sm:$0xf]
        %v234 = vld [vmem:[%s201 + $0x4] sm:$0xf]
        %v235 = vunpack.c.l.bf16 %v233
        %v236 = vunpack.c.l.bf16 %v234
        %v237 = vmul.f32 %v231, %v235
        %v238 = vmul.f32 %v232, %v236
        %239 = vadd.xlane.f32.xlu0 %v237
        %v240 = vpop.xlane.xlu0 %239
        %241 = vadd.xlane.f32.xlu0 %v238
        %v242 = vpop.xlane.xlu0 %241
        %s243 = scalar_lea.vmem %s201, 8 [#allocation5]
        %v244 = vld [vmem:[%s243] sm:$0xf]
        %v245 = vld [vmem:[%s243 + $0x4] sm:$0xf]
        %v246 = vunpack.c.l.bf16 %v244
        %v247 = vunpack.c.l.bf16 %v245
        %v248 = vmul.f32 %v231, %v246
        %v249 = vmul.f32 %v232, %v247
        %250 = vadd.xlane.f32.xlu0 %v248
        %v251 = vpop.xlane.xlu0 %250
        %252 = vadd.xlane.f32.xlu0 %v249
        %v253 = vpop.xlane.xlu0 %252
        %v254 = vmax.f32 %v240, %v251
        %v255 = vmax.f32 %v242, %v253
        %v256 = vsub.f32 %v240, %v254
        %v257 = vsub.f32 %v242, %v255
        %v258 = vmul.f32 %v256, 1.442695
        %v259 = vpow.pop %v258
        %v260 = vmul.f32 %v257, 1.442695
        %v261 = vpow.pop %v260
        %v262 = vsub.f32 %v251, %v254
        %v263 = vsub.f32 %v253, %v255
        %v264 = vmul.f32 %v262, 1.442695
        %v265 = vpow.pop %v264
        %v266 = vmul.f32 %v263, 1.442695
        %v267 = vpow.pop %v266
        %v268 = vadd.f32 %v259, %v265
        %v269 = vadd.f32 %v261, %v267
        %s270 = scalar_lea.vmem %s201, 16 [#allocation5]
        %v271 = vld [vmem:[%s270] sm:$0xf]
        %v272 = vld [vmem:[%s270 + $0x4] sm:$0xf]
        %v273 = vunpack.c.l.bf16 %v271
        %v274 = vunpack.c.l.bf16 %v272
        %v275 = vmul.f32 %v231, %v273
        %v276 = vmul.f32 %v232, %v274
        %277 = vadd.xlane.f32.xlu0 %v275
        %v278 = vpop.xlane.xlu0 %277
        %279 = vadd.xlane.f32.xlu0 %v276
        %v280 = vpop.xlane.xlu0 %279
        %v281 = vmax.f32 %v254, %v278
        %v282 = vmax.f32 %v255, %v280
        %v283 = vsub.f32 %v254, %v281
        %v284 = vsub.f32 %v255, %v282
        %v285 = vmul.f32 %v283, 1.442695
        %v286 = vpow.pop %v285
        %v287 = vmul.f32 %v284, 1.442695
        %v288 = vpow.pop %v287
        %v289 = vmul.f32 %v268, %v286
        %v290 = vmul.f32 %v269, %v288
        %v291 = vsub.f32 %v278, %v281
        %v292 = vsub.f32 %v280, %v282
        %v293 = vmul.f32 %v291, 1.442695
        %v294 = vpow.pop %v293
        %v295 = vmul.f32 %v292, 1.442695
        %v296 = vpow.pop %v295
        %v297 = vadd.f32 %v289, %v294
        %v298 = vadd.f32 %v290, %v296
        %s299 = scalar_lea.vmem %s201, 24 [#allocation5]
        %v300 = vld [vmem:[%s299] sm:$0xf]
        %v301 = vld [vmem:[%s299 + $0x4] sm:$0xf]
        %v302 = vunpack.c.l.bf16 %v300
        %v303 = vunpack.c.l.bf16 %v301
        %v304 = vmul.f32 %v231, %v302
        %v305 = vmul.f32 %v232, %v303
        %306 = vadd.xlane.f32.xlu0 %v304
        %v307 = vpop.xlane.xlu0 %306
        %308 = vadd.xlane.f32.xlu0 %v305
        %v309 = vpop.xlane.xlu0 %308
        %v310 = vmax.f32 %v281, %v307
        %v311 = vmax.f32 %v282, %v309
        %v312 = vsub.f32 %v281, %v310
        %v313 = vsub.f32 %v282, %v311
        %v314 = vmul.f32 %v312, 1.442695
        %v315 = vpow.pop %v314
        %v316 = vmul.f32 %v313, 1.442695
        %v317 = vpow.pop %v316
        %v318 = vmul.f32 %v297, %v315
        %v319 = vmul.f32 %v298, %v317
        %v320 = vsub.f32 %v307, %v310
        %v321 = vsub.f32 %v309, %v311
        %v322 = vmul.f32 %v320, 1.442695
        %v323 = vpow.pop %v322
        %v324 = vmul.f32 %v321, 1.442695
        %v325 = vpow.pop %v324
        %v326 = vadd.f32 %v318, %v323
        %v327 = vadd.f32 %v319, %v325
        %s328 = scalar_lea.vmem %s201, 32 [#allocation5]
        %v329 = vld [vmem:[%s328] sm:$0xf]
        %v330 = vld [vmem:[%s328 + $0x4] sm:$0xf]
        %v331 = vunpack.c.l.bf16 %v329
        %v332 = vunpack.c.l.bf16 %v330
        %v333 = vmul.f32 %v231, %v331
        %v334 = vmul.f32 %v232, %v332
        %335 = vadd.xlane.f32.xlu0 %v333
        %v336 = vpop.xlane.xlu0 %335
        %337 = vadd.xlane.f32.xlu0 %v334
        %v338 = vpop.xlane.xlu0 %337
        %v339 = vmax.f32 %v310, %v336
        %v340 = vmax.f32 %v311, %v338
        %v341 = vsub.f32 %v310, %v339
        %v342 = vsub.f32 %v311, %v340
        %v343 = vmul.f32 %v341, 1.442695
        %v344 = vpow.pop %v343
        %v345 = vmul.f32 %v342, 1.442695
        %v346 = vpow.pop %v345
        %v347 = vmul.f32 %v326, %v344
        %v348 = vmul.f32 %v327, %v346
        %v349 = vsub.f32 %v336, %v339
        %v350 = vsub.f32 %v338, %v340
        %v351 = vmul.f32 %v349, 1.442695
        %v352 = vpow.pop %v351
        %v353 = vmul.f32 %v350, 1.442695
        %v354 = vpow.pop %v353
        %v355 = vadd.f32 %v347, %v352
        %v356 = vadd.f32 %v348, %v354
        %s357 = scalar_lea.vmem %s201, 40 [#allocation5]
        %v358 = vld [vmem:[%s357] sm:$0xf]
        %v359 = vld [vmem:[%s357 + $0x4] sm:$0xf]
        %v360 = vunpack.c.l.bf16 %v358
        %v361 = vunpack.c.l.bf16 %v359
        %v362 = vmul.f32 %v231, %v360
        %v363 = vmul.f32 %v232, %v361
        %364 = vadd.xlane.f32.xlu0 %v362
        %v365 = vpop.xlane.xlu0 %364
        %366 = vadd.xlane.f32.xlu0 %v363
        %v367 = vpop.xlane.xlu0 %366
        %v368 = vmax.f32 %v339, %v365
        %v369 = vmax.f32 %v340, %v367
        %v370 = vsub.f32 %v339, %v368
        %v371 = vsub.f32 %v340, %v369
        %v372 = vmul.f32 %v370, 1.442695
        %v373 = vpow.pop %v372
        %v374 = vmul.f32 %v371, 1.442695
        %v375 = vpow.pop %v374
        %v376 = vmul.f32 %v355, %v373
        %v377 = vmul.f32 %v356, %v375
        %v378 = vsub.f32 %v365, %v368
        %v379 = vsub.f32 %v367, %v369
        %v380 = vmul.f32 %v378, 1.442695
        %v381 = vpow.pop %v380
        %v382 = vmul.f32 %v379, 1.442695
        %v383 = vpow.pop %v382
        %v384 = vadd.f32 %v376, %v381
        %v385 = vadd.f32 %v377, %v383
        %s386 = scalar_lea.vmem %s201, 48 [#allocation5]
        %v387 = vld [vmem:[%s386] sm:$0xf]
        %v388 = vld [vmem:[%s386 + $0x4] sm:$0xf]
        %v389 = vunpack.c.l.bf16 %v387
        %v390 = vunpack.c.l.bf16 %v388
        %v391 = vmul.f32 %v231, %v389
        %v392 = vmul.f32 %v232, %v390
        %393 = vadd.xlane.f32.xlu0 %v391
        %v394 = vpop.xlane.xlu0 %393
        %395 = vadd.xlane.f32.xlu0 %v392
        %v396 = vpop.xlane.xlu0 %395
        %v397 = vmax.f32 %v368, %v394
        %v398 = vmax.f32 %v369, %v396
        %v399 = vsub.f32 %v368, %v397
        %v400 = vsub.f32 %v369, %v398
        %v401 = vmul.f32 %v399, 1.442695
        %v402 = vpow.pop %v401
        %v403 = vmul.f32 %v400, 1.442695
        %v404 = vpow.pop %v403
        %v405 = vmul.f32 %v384, %v402
        %v406 = vmul.f32 %v385, %v404
        %v407 = vsub.f32 %v394, %v397
        %v408 = vsub.f32 %v396, %v398
        %v409 = vmul.f32 %v407, 1.442695
        %v410 = vpow.pop %v409
        %v411 = vmul.f32 %v408, 1.442695
        %v412 = vpow.pop %v411
        %v413 = vadd.f32 %v405, %v410
        %v414 = vadd.f32 %v406, %v412
        %s415 = scalar_lea.vmem %s201, 56 [#allocation5]
        %v416 = vld [vmem:[%s415] sm:$0xf]
        %v417 = vld [vmem:[%s415 + $0x4] sm:$0xf]
        %v418 = vunpack.c.l.bf16 %v416
        %v419 = vunpack.c.l.bf16 %v417
        %v420 = vmul.f32 %v231, %v418
        %v421 = vmul.f32 %v232, %v419
        %422 = vadd.xlane.f32.xlu0 %v420
        %v423 = vpop.xlane.xlu0 %422
        %424 = vadd.xlane.f32.xlu0 %v421
        %v425 = vpop.xlane.xlu0 %424
        %v426 = vmax.f32 %v397, %v423
        %v427 = vmax.f32 %v398, %v425
        %v428 = vsub.f32 %v397, %v426
        %v429 = vsub.f32 %v398, %v427
        %v430 = vmul.f32 %v428, 1.442695
        %v431 = vpow.pop %v430
        %v432 = vmul.f32 %v429, 1.442695
        %v433 = vpow.pop %v432
        %v434 = vmul.f32 %v413, %v431
        %v435 = vmul.f32 %v414, %v433
        %v436 = vsub.f32 %v423, %v426
        %v437 = vsub.f32 %v425, %v427
        %v438 = vmul.f32 %v436, 1.442695
        %v439 = vpow.pop %v438
        %v440 = vmul.f32 %v437, 1.442695
        %v441 = vpow.pop %v440
        %v442 = vadd.f32 %v434, %v439
        %v443 = vadd.f32 %v435, %v441
        %s444 = scalar_lea.vmem %s201, 64 [#allocation5]
        %v445 = vld [vmem:[%s444] sm:$0xf]
        %v446 = vld [vmem:[%s444 + $0x4] sm:$0xf]
        %v447 = vunpack.c.l.bf16 %v445
        %v448 = vunpack.c.l.bf16 %v446
        %v449 = vmul.f32 %v231, %v447
        %v450 = vmul.f32 %v232, %v448
        %451 = vadd.xlane.f32.xlu0 %v449
        %v452 = vpop.xlane.xlu0 %451
        %453 = vadd.xlane.f32.xlu0 %v450
        %v454 = vpop.xlane.xlu0 %453
        %v455 = vmax.f32 %v426, %v452
        %v456 = vmax.f32 %v427, %v454
        %v457 = vsub.f32 %v426, %v455
        %v458 = vsub.f32 %v427, %v456
        %v459 = vmul.f32 %v457, 1.442695
        %v460 = vpow.pop %v459
        %v461 = vmul.f32 %v458, 1.442695
        %v462 = vpow.pop %v461
        %v463 = vmul.f32 %v442, %v460
        %v464 = vmul.f32 %v443, %v462
        %v465 = vsub.f32 %v452, %v455
        %v466 = vsub.f32 %v454, %v456
        %v467 = vmul.f32 %v465, 1.442695
        %v468 = vpow.pop %v467
        %v469 = vmul.f32 %v466, 1.442695
        %v470 = vpow.pop %v469
        %v471 = vadd.f32 %v463, %v468
        %v472 = vadd.f32 %v464, %v470
        %v473 = vsub.f32 %v455, %v240
        %v474 = vsub.f32 %v456, %v242
        %v475 = vlog2.pop %v471
        %v476 = vmul.f32 %v475, 0.6931472
        %v477 = vlog2.pop %v472
        %v478 = vmul.f32 %v477, 0.6931472
        %v479 = vadd.f32 %v473, %v476
        %v480 = vadd.f32 %v474, %v478
        %s481 = smul.u32 %s22, 16
        %v482 = vlaneseq
        %v483 = vshrl.u32 %v482, 7
        %v484 = vadd.s32 %v483, 8
        %v485 = vstv %s481
        %v486 = vadd.s32 %v485, %v483
        %v487 = vadd.s32 %v485, %v484
        %vm488 = vcmp.lt.s32.totalorder %v486, 40
        %vm489 = vcmp.lt.s32.totalorder %v487, 40
        %v490 = vsel %vm488, %v479, 0.0
        %v491 = vsel %vm489, %v480, 0.0
        %vm492 = vcmask 7168
        %v493 = vsel %vm492, %v490, 0.0
        %v494 = vsel %vm492, %v491, 0.0
        %v495 = vadd.f32 %v493, %v494
        %496 = vadd.xlane.f32.xlu0 %v495
        %v497 = vpop.xlane.xlu0 %496
        %v498 = vrot.slane %v497, 4
        %v499 = vadd.f32 %v497, %v498
        %v500 = vrot.slane %v499, 2
        %v501 = vadd.f32 %v499, %v500
        %v502 = vrot.slane %v501, 1
        %v503 = vadd.f32 %v501, %v502
        %s504 = vtos %v503
        %v505 = vstv %s504
        %506 = vst [vmem:[%s226] sm:$0xff] %v505
        %s507 = sand.u32 %s82, 1
        %s508 = scalar_lea.sflag [#allocation4], %s507
        %s509 = sand.u32 %s82, 1
        %s510 = smul.addr %s509, 8
        %s511 = scalar_lea.vmem [#allocation7], %s510
        // Predicated region
        $region37: #{tpu_custom_call.1} parent=27 // pred_check
          %p512 = pneg %p92
        $region38: #{tpu_custom_call.1} parent=27 // pred_check_branch
          %514 = sbr.rel (%p512) target = $region40
        $region39: #{tpu_custom_call.1} parent=27 // pred_region
          %s516 = ssub.s32 128, 128
          %517 = vsyncadd %s508, %s516
          %s518 = smul.addr %s22, 128
          %s519 = scalar_lea.hbm %s2, %s518
          %s521 = sshll.u32 %s511, 4
          %s522 = int_to_ptr.vmem [resolvable:$true] %s521
          %524 = dma.vmem_to_hbm [thread:$0]  %s522, 128, %s519, %s508
        $region40: #{tpu_custom_call.1} parent=27 // pred_fallthru
          _
      $region28: #{tpu_custom_call.1} parent=5 // pred_fallthru
        _
      %p525 = scmp.le.s32.totalorder 2, %s17
      // Predicated region
      $region41: #{tpu_custom_call.1} parent=5 // pred_check
        %p526 = pneg %p525
      $region42: #{tpu_custom_call.1} parent=5 // pred_check_branch
        %528 = sbr.rel (%p526) target = $region44
      $region43: #{tpu_custom_call.1} parent=5 // pred_region
        %s529 = ssub.s32 %s17, 2
        // Predicated region
        $region45: #{tpu_custom_call.1} parent=43 // pred_check
          %p530 = pneg %p98
        $region46: #{tpu_custom_call.1} parent=43 // pred_check_branch
          %532 = sbr.rel (%p530) target = $region48
        $region47: #{tpu_custom_call.1} parent=43 // pred_region
          %s533 = sand.u32 %s83, 1
          %s534 = scalar_lea.sflag [#allocation4], %s533
          %s535 = sand.u32 %s83, 1
          %s536 = smul.addr %s535, 8
          %s537 = scalar_lea.vmem [#allocation7], %s536
          %538 = dma.done %s534, 128
        $region48: #{tpu_custom_call.1} parent=43 // pred_fallthru
          _
      $region44: #{tpu_custom_call.1} parent=5 // pred_fallthru
        _
    $region6: #{tpu_custom_call.1} parent=1 // loop_footer
      %s21 = sadd.s32 1, %s17
    $region7: #{tpu_custom_call.1} parent=1 // loop_footer_branch
      %16 = sbr.rel target = $region3
    $region8: #{tpu_custom_call.1} parent=1 // loop_exit
      _
    %539 = vsyncpa [#allocation3], 1
    %s540 = scalar_lea.sflag [#allocation3], 1
    %541 = vsyncpa %s540, 1
    %542 = vsyncpa [#allocation6], 1
    %s543 = scalar_lea.sflag [#allocation6], 1
    %544 = vsyncpa %s543, 1
    %545 = vsyncpa [#allocation4], 1
    %s546 = scalar_lea.sflag [#allocation4], 1
    %547 = vsyncpa %s546, 1

</llo_original>
